<compile_context>
chip_gen: v6e
topology: v6e:2x2x1
jax: 0.10.0
libtpu: 0.0.40
codegen_flags: <defaults>
</compile_context>

<pallas_src>
import jax
import jax.numpy as jnp
from jax import lax
from jax.experimental import pallas as pl
from jax.experimental.pallas import tpu as pltpu


_DEFAULT_MAX_TILE_B = 128 * 1024   # ~3.5 MiB HBM traffic per grid step (f32 I/O).
_LANE_CHUNK = 512                  # in-kernel sub-slab width (~50 live vregs).
_MIN_GRID_STEPS = 8                # keep >=8 steps so ("parallel",) uses both v7x TCs.


def _round_up(n, m):
    return ((n + m - 1) // m) * m


def _choose_tile_b(b_pad, max_tile_b):
    # Big tiles amortize per-grid-step overhead; keep >= _MIN_GRID_STEPS steps
    # so megacore (v7x) can split batch tiles across TensorCores.
    tile = _round_up(pl.cdiv(b_pad, _MIN_GRID_STEPS), 512)
    tile = max(512, min(tile, max_tile_b))
    return min(tile, b_pad)


def _sanitize_tile_b(tile_b, b_pad):
    tile_b = min(int(tile_b), b_pad)
    tile_b = max(128, (tile_b // 128) * 128)   # lane axis: multiple of 128
    return min(tile_b, b_pad)


def _make_kernel(tile_b, chunk, fast_tanh):
    """Fused MLP kernel over one (4, tile_b) batch tile (batch on lanes)."""
    n_full = tile_b // chunk
    rem = tile_b - n_full * chunk          # static tail, multiple of 128

    def kernel(x_ref, w1_ref, b1_ref, w2_ref, b2_ref, w3_ref, b3_ref, o_ref):
        # Weights/biases have constant index_maps -> VMEM resident; load once.
        w1 = w1_ref[...]; w2 = w2_ref[...]; w3 = w3_ref[...]
        b1 = b1_ref[...]; b2 = b2_ref[...]; b3 = b3_ref[...]
        h1_dim, h2_dim, out_dim = w1.shape[0], w2.shape[0], w3.shape[0]

        def compute(xs, b1c, b2c, b3c):
            # Linear(4,32) + Tanh
            h1 = jnp.dot(w1, xs, preferred_element_type=jnp.float32) + b1c
            if fast_tanh:
                # bf16 tanh: ~2x EUP throughput on v6e/v7x (perf review item).
                h1 = jnp.tanh(h1.astype(jnp.bfloat16)).astype(jnp.float32)
            else:
                h1 = jnp.tanh(h1)
            # Linear(32,16) + ReLU
            h2 = jnp.dot(w2, h1, preferred_element_type=jnp.float32) + b2c
            h2 = jnp.maximum(h2, 0.0)
            # Linear(16,3)
            return jnp.dot(w3, h2, preferred_element_type=jnp.float32) + b3c

        # Hoisted bias broadcasts (JAX does not CSE broadcast_in_dim).
        b1c = jnp.broadcast_to(b1, (h1_dim, chunk))
        b2c = jnp.broadcast_to(b2, (h2_dim, chunk))
        b3c = jnp.broadcast_to(b3, (out_dim, chunk))

        def body(c, carry):
            start = pl.multiple_of(c * chunk, 128)
            xs = x_ref[:, pl.ds(start, chunk)]
            o_ref[:, pl.ds(start, chunk)] = compute(
                xs, b1c, b2c, b3c).astype(o_ref.dtype)
            return carry

        lax.fori_loop(0, n_full, body, 0, unroll=True if n_full <= 8 else 4)

        if rem:  # static tail when tile_b is not a multiple of the chunk
            start = n_full * chunk
            xs = x_ref[:, pl.ds(start, rem)]
            o_ref[:, pl.ds(start, rem)] = compute(
                xs,
                jnp.broadcast_to(b1, (h1_dim, rem)),
                jnp.broadcast_to(b2, (h2_dim, rem)),
                jnp.broadcast_to(b3, (out_dim, rem)),
            ).astype(o_ref.dtype)

    return kernel


def deep_mlp_forward_feature_major(x_t, params, *, tile_b=None,
                                   max_tile_b=_DEFAULT_MAX_TILE_B,
                                   fast_tanh=False):
    """Zero-relayout path: x_t is (4, B) feature-major; returns (3, B)."""
    w1, b1, w2, b2, w3, b3 = params
    f_in, B = x_t.shape

    # Pad batch only to the 128-lane granule; ragged last grid block handles
    # the rest (no rounding up to a full tile).
    b_pad = _round_up(B, 128)
    if b_pad != B:
        x_t = jnp.pad(x_t, ((0, 0), (0, b_pad - B)))

    if tile_b is None:
        tile_b = _choose_tile_b(b_pad, max_tile_b)
    tile_b = _sanitize_tile_b(tile_b, b_pad)
    chunk = tile_b if tile_b < _LANE_CHUNK else _LANE_CHUNK
    grid = (pl.cdiv(b_pad, tile_b),)

    # VMEM budget: double-buffered x/out streams, both padded to 8 sublanes.
    itemsize = x_t.dtype.itemsize
    stream_bytes = 2 * 2 * 8 * tile_b * itemsize
    compiler_params = pltpu.CompilerParams(
        dimension_semantics=("parallel",),
        vmem_limit_bytes=int(max(stream_bytes + (4 << 20), 16 << 20)),
    )

    const = lambda i: (0, 0)   # weights DMA'd once, VMEM-resident for all tiles
    out_t = pl.pallas_call(
        _make_kernel(tile_b, chunk, fast_tanh),
        out_shape=jax.ShapeDtypeStruct((w3.shape[0], b_pad), x_t.dtype),
        grid=grid,
        in_specs=[
            pl.BlockSpec((f_in, tile_b), lambda i: (0, i)),   # streamed x tile
            pl.BlockSpec(w1.shape, const),                    # (32, 4)
            pl.BlockSpec(b1.shape, const),                    # (32, 1)
            pl.BlockSpec(w2.shape, const),                    # (16, 32)
            pl.BlockSpec(b2.shape, const),                    # (16, 1)
            pl.BlockSpec(w3.shape, const),                    # (3, 16)
            pl.BlockSpec(b3.shape, const),                    # (3, 1)
        ],
        out_specs=pl.BlockSpec((w3.shape[0], tile_b), lambda i: (0, i)),
        compiler_params=compiler_params,
    )(x_t, w1, b1, w2, b2, w3, b3)

    return out_t[:, :B] if b_pad != B else out_t


def deep_mlp_forward(x, params, **kwargs):
    """PyTorch-compatible contract: (B, 4) -> (B, 3).

    NOTE: the batch-major <-> feature-major relayout at this boundary reads the
    data one extra time; for peak HBM efficiency call
    deep_mlp_forward_feature_major with (4, B) data directly.
    """
    return deep_mlp_forward_feature_major(x.T, params, **kwargs).T


def init_params(key):
    """PyTorch nn.Linear default init: U(-1/sqrt(fan_in), 1/sqrt(fan_in)).

    Weights stored as (out_features, in_features); biases as (out_features, 1)
    so they broadcast along the lane (batch) axis inside the kernel.
    """
    ks = jax.random.split(key, 6)

    def linear(kw, kb, fan_in, fan_out):
        bound = 1.0 / jnp.sqrt(float(fan_in))
        w = jax.random.uniform(kw, (fan_out, fan_in), jnp.float32, -bound, bound)
        b = jax.random.uniform(kb, (fan_out, 1), jnp.float32, -bound, bound)
        return w, b

    w1, b1 = linear(ks[0], ks[1], 4, 32)
    w2, b2 = linear(ks[2], ks[3], 32, 16)
    w3, b3 = linear(ks[4], ks[5], 16, 3)
    return (w1, b1, w2, b2, w3, b3)


def _reference_forward(x, params):
    """Pure-JAX reference matching the PyTorch DeepMLP forward (f32)."""
    w1, b1, w2, b2, w3, b3 = params
    h = jnp.tanh(x @ w1.T + b1.ravel())
    h = jnp.maximum(h @ w2.T + b2.ravel(), 0.0)
    return h @ w3.T + b3.ravel()


if __name__ == "__main__":
    key = jax.random.PRNGKey(0)
    kp, k1, k2, k3 = jax.random.split(key, 4)
    params = init_params(kp)

    # 1) Small-shape check, PyTorch contract (B, 4) -> (B, 3).
    x_small = jax.random.normal(k1, (8, 4), dtype=jnp.float32)
    out_small = jax.block_until_ready(deep_mlp_forward(x_small, params))
    ref_small = _reference_forward(x_small, params)
    assert out_small.shape == (8, 3)
    assert jnp.allclose(out_small, ref_small, atol=1e-4, rtol=1e-4)

    # 2) Multi-tile streaming + ragged last grid block + multi-chunk inner loop.
    x_multi = jax.random.normal(k2, (2176, 4), dtype=jnp.float32)
    out_multi = jax.block_until_ready(
        deep_mlp_forward(x_multi, params, tile_b=1024))
    ref_multi = _reference_forward(x_multi, params)
    assert out_multi.shape == (2176, 3)
    assert jnp.allclose(out_multi, ref_multi, atol=1e-4, rtol=1e-4)

    # 3) Feature-major zero-relayout path + bf16-tanh fast path (v6e/v7x EUP
    #    fix), checked at a bf16-appropriate tolerance.
    x_fm = jax.random.normal(k3, (4, 1333), dtype=jnp.float32)
    out_fm = jax.block_until_ready(
        deep_mlp_forward_feature_major(x_fm, params, fast_tanh=True))
    ref_fm = _reference_forward(x_fm.T, params).T
    assert out_fm.shape == (3, 1333)
    assert bool(jnp.all(jnp.isfinite(out_fm)))
    assert jnp.allclose(out_fm, ref_fm, atol=1e-1, rtol=1e-1)

    print("KERNEL_OK")
</pallas_src>

<mosaic_0001>
module attributes {stable_mosaic.version = 11 : i64} {
  func.func @kernel(%arg0: i32, %arg1: memref<4x128xf32, #tpu.memory_space<vmem>>, %arg2: memref<32x4xf32, #tpu.memory_space<vmem>>, %arg3: memref<32x1xf32, #tpu.memory_space<vmem>>, %arg4: memref<16x32xf32, #tpu.memory_space<vmem>>, %arg5: memref<16x1xf32, #tpu.memory_space<vmem>>, %arg6: memref<3x16xf32, #tpu.memory_space<vmem>>, %arg7: memref<3x1xf32, #tpu.memory_space<vmem>>, %arg8: memref<3x128xf32, #tpu.memory_space<vmem>>) attributes {dimension_semantics = [#tpu.dimension_semantics<parallel>], iteration_bounds = array<i64: 1>, scalar_prefetch = 0 : i64, scratch_operands = 0 : i64, tpu.core_type = #tpu.core_type<tc>, window_params = [{transform_indices = @transform_0, window_bounds = array<i64: 4, 128>}, {pipeline_mode = #tpu.pipeline_mode<synchronous>, transform_indices = @transform_1, window_bounds = array<i64: 32, 4>}, {pipeline_mode = #tpu.pipeline_mode<synchronous>, transform_indices = @transform_2, window_bounds = array<i64: 32, 1>}, {pipeline_mode = #tpu.pipeline_mode<synchronous>, transform_indices = @transform_3, window_bounds = array<i64: 16, 32>}, {pipeline_mode = #tpu.pipeline_mode<synchronous>, transform_indices = @transform_4, window_bounds = array<i64: 16, 1>}, {pipeline_mode = #tpu.pipeline_mode<synchronous>, transform_indices = @transform_5, window_bounds = array<i64: 3, 16>}, {pipeline_mode = #tpu.pipeline_mode<synchronous>, transform_indices = @transform_6, window_bounds = array<i64: 3, 1>}, {transform_indices = @transform_7, window_bounds = array<i64: 3, 128>}]} {
    %c0 = arith.constant 0 : index
    %c0_0 = arith.constant 0 : index
    %0 = vector.load %arg2[%c0, %c0_0] : memref<32x4xf32, #tpu.memory_space<vmem>>, vector<32x4xf32>
    %c0_1 = arith.constant 0 : index
    %c0_2 = arith.constant 0 : index
    %1 = vector.load %arg4[%c0_1, %c0_2] : memref<16x32xf32, #tpu.memory_space<vmem>>, vector<16x32xf32>
    %c0_3 = arith.constant 0 : index
    %c0_4 = arith.constant 0 : index
    %2 = vector.load %arg6[%c0_3, %c0_4] : memref<3x16xf32, #tpu.memory_space<vmem>>, vector<3x16xf32>
    %c0_5 = arith.constant 0 : index
    %c0_6 = arith.constant 0 : index
    %3 = vector.load %arg3[%c0_5, %c0_6] : memref<32x1xf32, #tpu.memory_space<vmem>>, vector<32x1xf32>
    %c0_7 = arith.constant 0 : index
    %c0_8 = arith.constant 0 : index
    %4 = vector.load %arg5[%c0_7, %c0_8] : memref<16x1xf32, #tpu.memory_space<vmem>>, vector<16x1xf32>
    %c0_9 = arith.constant 0 : index
    %c0_10 = arith.constant 0 : index
    %5 = vector.load %arg7[%c0_9, %c0_10] : memref<3x1xf32, #tpu.memory_space<vmem>>, vector<3x1xf32>
    %6 = vector.shape_cast %3 : vector<32x1xf32> to vector<32x1xf32>
    %7 = vector.broadcast %6 : vector<32x1xf32> to vector<32x128xf32>
    %8 = vector.shape_cast %4 : vector<16x1xf32> to vector<16x1xf32>
    %9 = vector.broadcast %8 : vector<16x1xf32> to vector<16x128xf32>
    %10 = vector.shape_cast %5 : vector<3x1xf32> to vector<3x1xf32>
    %11 = vector.broadcast %10 : vector<3x1xf32> to vector<3x128xf32>
    %c0_i32 = arith.constant 0 : i32
    %c128_i32 = arith.constant 128 : i32
    %12 = arith.muli %c0_i32, %c128_i32 : i32
    %13 = tpu.assume_multiple %12, 128 : i32
    %c0_11 = arith.constant 0 : index
    %14 = arith.index_cast %13 : i32 to index
    %15 = vector.load %arg1[%c0_11, %14] : memref<4x128xf32, #tpu.memory_space<vmem>>, vector<4x128xf32>
    %cst = arith.constant dense<0.000000e+00> : vector<32x128xf32>
    %16 = tpu.matmul %0, %15, %cst {dimension_numbers = #tpu.dot_dimension_numbers<[1], [0], [0], [1], [0, 0, 1, 1], [], []>} : vector<32x4xf32>, vector<4x128xf32>, vector<32x128xf32> -> vector<32x128xf32>
    %17 = arith.addf %16, %7 : vector<32x128xf32>
    %18 = math.tanh %17 : vector<32x128xf32>
    %cst_12 = arith.constant dense<0.000000e+00> : vector<16x128xf32>
    %19 = tpu.matmul %1, %18, %cst_12 {dimension_numbers = #tpu.dot_dimension_numbers<[1], [0], [0], [1], [0, 0, 1, 1], [], []>} : vector<16x32xf32>, vector<32x128xf32>, vector<16x128xf32> -> vector<16x128xf32>
    %20 = arith.addf %19, %9 : vector<16x128xf32>
    %cst_13 = arith.constant 0.000000e+00 : f32
    %21 = vector.broadcast %cst_13 : f32 to vector<16x128xf32>
    %22 = arith.maximumf %20, %21 : vector<16x128xf32>
    %cst_14 = arith.constant dense<0.000000e+00> : vector<3x128xf32>
    %23 = tpu.matmul %2, %22, %cst_14 {dimension_numbers = #tpu.dot_dimension_numbers<[1], [0], [0], [1], [0, 0, 1, 1], [], []>} : vector<3x16xf32>, vector<16x128xf32>, vector<3x128xf32> -> vector<3x128xf32>
    %24 = arith.addf %23, %11 : vector<3x128xf32>
    %c0_15 = arith.constant 0 : index
    %25 = arith.index_cast %13 : i32 to index
    %26 = vector.load %arg8[%c0_15, %25] : memref<3x128xf32, #tpu.memory_space<vmem>>, vector<3x128xf32>
    tpu.vector_store %arg8[%c0_15, %25], %24 {strides = array<i32>} : memref<3x128xf32, #tpu.memory_space<vmem>>, vector<3x128xf32>,
    %c1_i32 = arith.constant 1 : i32
    return
  }
  func.func @transform_0(%arg0: i32) -> (i32, i32) {
    %c0_i32 = arith.constant 0 : i32
    %c0_i32_0 = arith.constant 0 : i32
    return %c0_i32, %arg0 : i32, i32
  }
  func.func @transform_1(%arg0: i32) -> (i32, i32) {
    %c0_i32 = arith.constant 0 : i32
    %c0_i32_0 = arith.constant 0 : i32
    %c0_i32_1 = arith.constant 0 : i32
    return %c0_i32, %c0_i32_0 : i32, i32
  }
  func.func @transform_2(%arg0: i32) -> (i32, i32) {
    %c0_i32 = arith.constant 0 : i32
    %c0_i32_0 = arith.constant 0 : i32
    %c0_i32_1 = arith.constant 0 : i32
    return %c0_i32, %c0_i32_0 : i32, i32
  }
  func.func @transform_3(%arg0: i32) -> (i32, i32) {
    %c0_i32 = arith.constant 0 : i32
    %c0_i32_0 = arith.constant 0 : i32
    %c0_i32_1 = arith.constant 0 : i32
    return %c0_i32, %c0_i32_0 : i32, i32
  }
  func.func @transform_4(%arg0: i32) -> (i32, i32) {
    %c0_i32 = arith.constant 0 : i32
    %c0_i32_0 = arith.constant 0 : i32
    %c0_i32_1 = arith.constant 0 : i32
    return %c0_i32, %c0_i32_0 : i32, i32
  }
  func.func @transform_5(%arg0: i32) -> (i32, i32) {
    %c0_i32 = arith.constant 0 : i32
    %c0_i32_0 = arith.constant 0 : i32
    %c0_i32_1 = arith.constant 0 : i32
    return %c0_i32, %c0_i32_0 : i32, i32
  }
  func.func @transform_6(%arg0: i32) -> (i32, i32) {
    %c0_i32 = arith.constant 0 : i32
    %c0_i32_0 = arith.constant 0 : i32
    %c0_i32_1 = arith.constant 0 : i32
    return %c0_i32, %c0_i32_0 : i32, i32
  }
  func.func @transform_7(%arg0: i32) -> (i32, i32) {
    %c0_i32 = arith.constant 0 : i32
    %c0_i32_0 = arith.constant 0 : i32
    return %c0_i32, %arg0 : i32, i32
  }
}

</mosaic_0001>

<llo_original>
// kernel: tpu_custom_call.1
$region0: #{tpu_custom_call.1}
  #allocation0 [shape = 'u32[]', space=smem, size = 0x4, offset = 0x4, fixed_abs, tag = 'smem constant byte address 0x4 - core index']
  #allocation1 [shape = 'u32[144,128]{1,0:T(1,128)}', space=vmem, size = 0x12000, scoped, tag = 'internal scratch']
  %s0 = inlined_call_operand.vmem [shape: f32[4,128], index: 0, kind: input, shape index: {}]
  %s1 = inlined_call_operand.vmem [shape: f32[32,4], index: 1, kind: input, shape index: {}]
  %s2 = inlined_call_operand.vmem [shape: f32[32,1], index: 2, kind: input, shape index: {}]
  %s3 = inlined_call_operand.vmem [shape: f32[16,32], index: 3, kind: input, shape index: {}]
  %s4 = inlined_call_operand.vmem [shape: f32[16,1], index: 4, kind: input, shape index: {}]
  %s5 = inlined_call_operand.vmem [shape: f32[3,16], index: 5, kind: input, shape index: {}]
  %s6 = inlined_call_operand.vmem [shape: f32[3,1], index: 6, kind: input, shape index: {}]
  %s7 = inlined_call_operand.hbm [shape: f32[3,128], index: 7, kind: output, shape index: {}]
  %s8 = sld [smem:[#allocation0]]
  $region38: #{tpu_custom_call.1} parent=0
    _
  %s10 = ssub.s32 1, %s8
  %s11 = scalar_select 0, %s10, %s8
  $region1: #{tpu_custom_call.1} parent=0
    #allocation2 [shape = 'u8[2048]{0}', space=vmem, size = 0x800, scoped, tag = 'output window, operand 0, single buffered']
    #allocation3 [shape = 's32[1]{0}', space=sflag, size = 0x4, scoped, tag = 'scoped memory for tpu_custom_call.1']
    %12 = vsyncpa [#allocation3], 0
    // Predicated region
    $region2: #{tpu_custom_call.1} parent=1 // pred_check
      _
    $region3: #{tpu_custom_call.1} parent=1 // pred_check_branch
      %14 = sbr.rel (0) target = $region5
    $region4: #{tpu_custom_call.1} parent=1 // pred_region
      _
    $region5: #{tpu_custom_call.1} parent=1 // pred_fallthru
      _
    // Predicated region
    $region6: #{tpu_custom_call.1} parent=1 // pred_check
      _
    $region7: #{tpu_custom_call.1} parent=1 // pred_check_branch
      %16 = sbr.rel (0) target = $region9
    $region8: #{tpu_custom_call.1} parent=1 // pred_region
      _
    $region9: #{tpu_custom_call.1} parent=1 // pred_fallthru
      _
    // Predicated region
    $region10: #{tpu_custom_call.1} parent=1 // pred_check
      _
    $region11: #{tpu_custom_call.1} parent=1 // pred_check_branch
      %18 = sbr.rel (0) target = $region13
    $region12: #{tpu_custom_call.1} parent=1 // pred_region
      _
    $region13: #{tpu_custom_call.1} parent=1 // pred_fallthru
      _
    // Predicated region
    $region14: #{tpu_custom_call.1} parent=1 // pred_check
      _
    $region15: #{tpu_custom_call.1} parent=1 // pred_check_branch
      %20 = sbr.rel (0) target = $region17
    $region16: #{tpu_custom_call.1} parent=1 // pred_region
      _
    $region17: #{tpu_custom_call.1} parent=1 // pred_fallthru
      _
    // Predicated region
    $region18: #{tpu_custom_call.1} parent=1 // pred_check
      _
    $region19: #{tpu_custom_call.1} parent=1 // pred_check_branch
      %22 = sbr.rel (0) target = $region21
    $region20: #{tpu_custom_call.1} parent=1 // pred_region
      _
    $region21: #{tpu_custom_call.1} parent=1 // pred_fallthru
      _
    // Predicated region
    $region22: #{tpu_custom_call.1} parent=1 // pred_check
      _
    $region23: #{tpu_custom_call.1} parent=1 // pred_check_branch
      %24 = sbr.rel (0) target = $region25
    $region24: #{tpu_custom_call.1} parent=1 // pred_region
      _
    $region25: #{tpu_custom_call.1} parent=1 // pred_fallthru
      _
    // Predicated region
    $region26: #{tpu_custom_call.1} parent=1 // pred_check
      _
    $region27: #{tpu_custom_call.1} parent=1 // pred_check_branch
      %26 = sbr.rel (0) target = $region29
    $region28: #{tpu_custom_call.1} parent=1 // pred_region
      _
    $region29: #{tpu_custom_call.1} parent=1 // pred_fallthru
      _
    %v27 = vld [vmem:[%s1] sm:$0xff]
    %v28 = vld [vmem:[%s1 + $0x8] sm:$0xff]
    %v29 = vld [vmem:[%s1 + $0x10] sm:$0xff]
    %v30 = vld [vmem:[%s1 + $0x18] sm:$0xff]
    %v31 = vld [vmem:[%s3] sm:$0xff]
    %v32 = vld [vmem:[%s3 + $0x8] sm:$0xff]
    %v33 = vld [vmem:[%s5] sm:$0x7]
    %v34 = vld [vmem:[%s2] sm:$0xff]
    %v35 = vld [vmem:[%s2 + $0x8] sm:$0xff]
    %v36 = vld [vmem:[%s2 + $0x10] sm:$0xff]
    %v37 = vld [vmem:[%s2 + $0x18] sm:$0xff]
    %v38 = vld [vmem:[%s4] sm:$0xff]
    %v39 = vld [vmem:[%s4 + $0x8] sm:$0xff]
    %v40 = vld [vmem:[%s6] sm:$0x7]
    %42 = vset.pattern.permute.xlu0 0
    %43 = vperm.xlu0 %42, %v34
    %v44 = vpop.permute.xlu0 %43
    %47 = vset.pattern.permute.xlu0 0
    %48 = vperm.xlu0 %47, %v35
    %v49 = vpop.permute.xlu0 %48
    %52 = vset.pattern.permute.xlu0 0
    %53 = vperm.xlu0 %52, %v36
    %v54 = vpop.permute.xlu0 %53
    %57 = vset.pattern.permute.xlu0 0
    %58 = vperm.xlu0 %57, %v37
    %v59 = vpop.permute.xlu0 %58
    %62 = vset.pattern.permute.xlu0 0
    %63 = vperm.xlu0 %62, %v38
    %v64 = vpop.permute.xlu0 %63
    %67 = vset.pattern.permute.xlu0 0
    %68 = vperm.xlu0 %67, %v39
    %v69 = vpop.permute.xlu0 %68
    %72 = vset.pattern.permute.xlu0 0
    %73 = vperm.xlu0 %72, %v40
    %v74 = vpop.permute.xlu0 %73
    %v76 = vld [vmem:[%s0] sm:$0xf]
    %vm77 = vcmask 31744
    %v79 = vsel %vm77, %v27, 0
    %v82 = vsel %vm77, %v28, 0
    %v85 = vsel %vm77, %v29, 0
    %v88 = vsel %vm77, %v30, 0
    %vm90 = vcmask 1043456
    %v92 = vsel %vm90, %v76, 0
    %94 = vmatprep.subr.mxu0 0.0
    %95 = vmatpush1.msra.mxu0 0.0
    %96 = vmatprep.subr.mxu0 0.0
    %97 = vmatpush1.msra.mxu0 0.0
    %98 = vmatprep.subr.mxu0 0.0
    %99 = vmatpush1.msra.mxu0 0.0
    %100 = vmatprep.subr.mxu0 0.0
    %101 = vmatpush1.msra.mxu0 0.0
    %102 = vmatprep.subr.mxu0 0.0
    %103 = vmatpush1.msra.mxu0 0.0
    %104 = vmatprep.subr.mxu0 0.0
    %105 = vmatpush1.msra.mxu0 0.0
    %106 = vmatprep.subr.mxu0 0.0
    %107 = vmatpush1.msra.mxu0 0.0
    %108 = vmatprep.subr.mxu0 0.0
    %109 = vmatpush1.msra.mxu0 0.0
    %110 = vmatprep.subr.mxu0 0.0
    %111 = vmatpush1.msra.mxu0 0.0
    %112 = vmatprep.subr.mxu0 0.0
    %113 = vmatpush1.msra.mxu0 0.0
    %114 = vmatprep.subr.mxu0 0.0
    %115 = vmatpush1.msra.mxu0 0.0
    %116 = vmatprep.subr.mxu0 0.0
    %117 = vmatpush1.msra.mxu0 0.0
    %118 = vmatprep.subr.mxu0 0.0
    %119 = vmatpush1.msra.mxu0 0.0
    %120 = vmatprep.subr.mxu0 0.0
    %121 = vmatpush1.msra.mxu0 0.0
    %122 = vmatprep.subr.mxu0 0.0
    %123 = vmatpush1.msra.mxu0 0.0
    %124 = vmatprep.subr.mxu0 0.0
    %125 = vmatpush1.msra.mxu0 %v92
    %126 = vmatprep.subr.mxu0 0.0
    %127 = vmatpush2.msra.mxu0 0.0
    %128 = vmatprep.subr.mxu0 0.0
    %129 = vmatpush2.msra.mxu0 0.0
    %130 = vmatprep.subr.mxu0 0.0
    %131 = vmatpush2.msra.mxu0 0.0
    %132 = vmatprep.subr.mxu0 0.0
    %133 = vmatpush2.msra.mxu0 0.0
    %134 = vmatprep.subr.mxu0 0.0
    %135 = vmatpush2.msra.mxu0 0.0
    %136 = vmatprep.subr.mxu0 0.0
    %137 = vmatpush2.msra.mxu0 0.0
    %138 = vmatprep.subr.mxu0 0.0
    %139 = vmatpush2.msra.mxu0 0.0
    %140 = vmatprep.subr.mxu0 0.0
    %141 = vmatpush2.msra.mxu0 0.0
    %142 = vmatprep.subr.mxu0 0.0
    %143 = vmatpush2.msra.mxu0 0.0
    %144 = vmatprep.subr.mxu0 0.0
    %145 = vmatpush2.msra.mxu0 0.0
    %146 = vmatprep.subr.mxu0 0.0
    %147 = vmatpush2.msra.mxu0 0.0
    %148 = vmatprep.subr.mxu0 0.0
    %149 = vmatpush2.msra.mxu0 0.0
    %150 = vmatprep.subr.mxu0 0.0
    %151 = vmatpush2.msra.mxu0 0.0
    %152 = vmatprep.subr.mxu0 0.0
    %153 = vmatpush2.msra.mxu0 0.0
    %154 = vmatprep.subr.mxu0 0.0
    %155 = vmatpush2.msra.mxu0 0.0
    %156 = vmatprep.subr.mxu0 0.0
    %157 = vmatpush2.msra.mxu0 0.0
    %158 = vmatprep.mubr.f32.mxu0 0.0
    %159 = vmatmul.mubr.f32.gmra.mxu0 %v79
    %v160 = vpop.f32.mrf.mxu0
    %v161 = vadd.f32 %v44, %v160
    %v162 = vpop.f32.mrf.mxu0
    %163 = vmatprep.mubr.f32.mxu0 0.0
    %164 = vmatmul.mubr.f32.gmra.mxu0 %v82
    %v165 = vpop.f32.mrf.mxu0
    %v166 = vadd.f32 %v49, %v165
    %v167 = vpop.f32.mrf.mxu0
    %168 = vmatprep.mubr.f32.mxu0 0.0
    %169 = vmatmul.mubr.f32.gmra.mxu0 %v85
    %v170 = vpop.f32.mrf.mxu0
    %v171 = vadd.f32 %v54, %v170
    %v172 = vpop.f32.mrf.mxu0
    %173 = vmatprep.mubr.f32.mxu0 0.0
    %174 = vmatmul.mubr.f32.gmra.mxu0 %v88
    %v175 = vpop.f32.mrf.mxu0
    %v176 = vadd.f32 %v59, %v175
    %v177 = vpop.f32.mrf.mxu0
    %178 = vdwg.mxu0
    %v179 = vtanh.pop %v161
    %v180 = vtanh.pop %v166
    %v181 = vtanh.pop %v171
    %v182 = vtanh.pop %v176
    %vm183 = vcmask 261120
    %v185 = vsel %vm183, %v31, 0
    %v188 = vsel %vm183, %v32, 0
    %190 = vmatprep.subr.mxu0 0.0
    %191 = vmatpush1.msra.mxu0 0.0
    %192 = vmatprep.subr.mxu0 0.0
    %193 = vmatpush1.msra.mxu0 0.0
    %194 = vmatprep.subr.mxu0 0.0
    %195 = vmatpush1.msra.mxu0 0.0
    %196 = vmatprep.subr.mxu0 0.0
    %197 = vmatpush1.msra.mxu0 0.0
    %198 = vmatprep.subr.mxu0 0.0
    %199 = vmatpush1.msra.mxu0 0.0
    %200 = vmatprep.subr.mxu0 0.0
    %201 = vmatpush1.msra.mxu0 0.0
    %202 = vmatprep.subr.mxu0 0.0
    %203 = vmatpush1.msra.mxu0 0.0
    %204 = vmatprep.subr.mxu0 0.0
    %205 = vmatpush1.msra.mxu0 0.0
    %206 = vmatprep.subr.mxu0 0.0
    %207 = vmatpush1.msra.mxu0 0.0
    %208 = vmatprep.subr.mxu0 0.0
    %209 = vmatpush1.msra.mxu0 0.0
    %210 = vmatprep.subr.mxu0 0.0
    %211 = vmatpush1.msra.mxu0 0.0
    %212 = vmatprep.subr.mxu0 0.0
    %213 = vmatpush1.msra.mxu0 0.0
    %214 = vmatprep.subr.mxu0 0.0
    %215 = vmatpush1.msra.mxu0 %v182
    %216 = vmatprep.subr.mxu0 0.0
    %217 = vmatpush1.msra.mxu0 %v181
    %218 = vmatprep.subr.mxu0 0.0
    %219 = vmatpush1.msra.mxu0 %v180
    %220 = vmatprep.subr.mxu0 0.0
    %221 = vmatpush1.msra.mxu0 %v179
    %222 = vmatprep.subr.mxu0 0.0
    %223 = vmatpush2.msra.mxu0 0.0
    %224 = vmatprep.subr.mxu0 0.0
    %225 = vmatpush2.msra.mxu0 0.0
    %226 = vmatprep.subr.mxu0 0.0
    %227 = vmatpush2.msra.mxu0 0.0
    %228 = vmatprep.subr.mxu0 0.0
    %229 = vmatpush2.msra.mxu0 0.0
    %230 = vmatprep.subr.mxu0 0.0
    %231 = vmatpush2.msra.mxu0 0.0
    %232 = vmatprep.subr.mxu0 0.0
    %233 = vmatpush2.msra.mxu0 0.0
    %234 = vmatprep.subr.mxu0 0.0
    %235 = vmatpush2.msra.mxu0 0.0
    %236 = vmatprep.subr.mxu0 0.0
    %237 = vmatpush2.msra.mxu0 0.0
    %238 = vmatprep.subr.mxu0 0.0
    %239 = vmatpush2.msra.mxu0 0.0
    %240 = vmatprep.subr.mxu0 0.0
    %241 = vmatpush2.msra.mxu0 0.0
    %242 = vmatprep.subr.mxu0 0.0
    %243 = vmatpush2.msra.mxu0 0.0
    %244 = vmatprep.subr.mxu0 0.0
    %245 = vmatpush2.msra.mxu0 0.0
    %246 = vmatprep.subr.mxu0 0.0
    %247 = vmatpush2.msra.mxu0 0.0
    %248 = vmatprep.subr.mxu0 0.0
    %249 = vmatpush2.msra.mxu0 0.0
    %250 = vmatprep.subr.mxu0 0.0
    %251 = vmatpush2.msra.mxu0 0.0
    %252 = vmatprep.subr.mxu0 0.0
    %253 = vmatpush2.msra.mxu0 0.0
    %254 = vmatprep.mubr.f32.mxu0 0.0
    %255 = vmatmul.mubr.f32.gmra.mxu0 %v185
    %v256 = vpop.f32.mrf.mxu0
    %v257 = vadd.f32 %v64, %v256
    %v258 = vpop.f32.mrf.mxu0
    %259 = vmatprep.mubr.f32.mxu0 0.0
    %260 = vmatmul.mubr.f32.gmra.mxu0 %v188
    %v261 = vpop.f32.mrf.mxu0
    %v262 = vadd.f32 %v69, %v261
    %v263 = vpop.f32.mrf.mxu0
    %264 = vdwg.mxu0
    %v265 = vmax.f32 %v257, 0.0
    %v266 = vmax.f32 %v262, 0.0
    %vm267 = vcmask 130048
    %v269 = vsel %vm267, %v33, 0
    %271 = vmatprep.subr.mxu0 0.0
    %272 = vmatpush1.msra.mxu0 0.0
    %273 = vmatprep.subr.mxu0 0.0
    %274 = vmatpush1.msra.mxu0 0.0
    %275 = vmatprep.subr.mxu0 0.0
    %276 = vmatpush1.msra.mxu0 0.0
    %277 = vmatprep.subr.mxu0 0.0
    %278 = vmatpush1.msra.mxu0 0.0
    %279 = vmatprep.subr.mxu0 0.0
    %280 = vmatpush1.msra.mxu0 0.0
    %281 = vmatprep.subr.mxu0 0.0
    %282 = vmatpush1.msra.mxu0 0.0
    %283 = vmatprep.subr.mxu0 0.0
    %284 = vmatpush1.msra.mxu0 0.0
    %285 = vmatprep.subr.mxu0 0.0
    %286 = vmatpush1.msra.mxu0 0.0
    %287 = vmatprep.subr.mxu0 0.0
    %288 = vmatpush1.msra.mxu0 0.0
    %289 = vmatprep.subr.mxu0 0.0
    %290 = vmatpush1.msra.mxu0 0.0
    %291 = vmatprep.subr.mxu0 0.0
    %292 = vmatpush1.msra.mxu0 0.0
    %293 = vmatprep.subr.mxu0 0.0
    %294 = vmatpush1.msra.mxu0 0.0
    %295 = vmatprep.subr.mxu0 0.0
    %296 = vmatpush1.msra.mxu0 0.0
    %297 = vmatprep.subr.mxu0 0.0
    %298 = vmatpush1.msra.mxu0 0.0
    %299 = vmatprep.subr.mxu0 0.0
    %300 = vmatpush1.msra.mxu0 %v266
    %301 = vmatprep.subr.mxu0 0.0
    %302 = vmatpush1.msra.mxu0 %v265
    %303 = vmatprep.subr.mxu0 0.0
    %304 = vmatpush2.msra.mxu0 0.0
    %305 = vmatprep.subr.mxu0 0.0
    %306 = vmatpush2.msra.mxu0 0.0
    %307 = vmatprep.subr.mxu0 0.0
    %308 = vmatpush2.msra.mxu0 0.0
    %309 = vmatprep.subr.mxu0 0.0
    %310 = vmatpush2.msra.mxu0 0.0
    %311 = vmatprep.subr.mxu0 0.0
    %312 = vmatpush2.msra.mxu0 0.0
    %313 = vmatprep.subr.mxu0 0.0
    %314 = vmatpush2.msra.mxu0 0.0
    %315 = vmatprep.subr.mxu0 0.0
    %316 = vmatpush2.msra.mxu0 0.0
    %317 = vmatprep.subr.mxu0 0.0
    %318 = vmatpush2.msra.mxu0 0.0
    %319 = vmatprep.subr.mxu0 0.0
    %320 = vmatpush2.msra.mxu0 0.0
    %321 = vmatprep.subr.mxu0 0.0
    %322 = vmatpush2.msra.mxu0 0.0
    %323 = vmatprep.subr.mxu0 0.0
    %324 = vmatpush2.msra.mxu0 0.0
    %325 = vmatprep.subr.mxu0 0.0
    %326 = vmatpush2.msra.mxu0 0.0
    %327 = vmatprep.subr.mxu0 0.0
    %328 = vmatpush2.msra.mxu0 0.0
    %329 = vmatprep.subr.mxu0 0.0
    %330 = vmatpush2.msra.mxu0 0.0
    %331 = vmatprep.subr.mxu0 0.0
    %332 = vmatpush2.msra.mxu0 0.0
    %333 = vmatprep.subr.mxu0 0.0
    %334 = vmatpush2.msra.mxu0 0.0
    %335 = vmatprep.mubr.f32.mxu0 0.0
    %336 = vmatmul.mubr.f32.gmra.mxu0 %v269
    %v337 = vpop.f32.mrf.mxu0
    %v338 = vadd.f32 %v74, %v337
    %v339 = vpop.f32.mrf.mxu0
    %340 = vdwg.mxu0
    %341 = vst [vmem:[#allocation2] sm:$0x7] %v338
    // Predicated region
    $region30: #{tpu_custom_call.1} parent=1 // pred_check
      _
    $region31: #{tpu_custom_call.1} parent=1 // pred_check_branch
      %343 = sbr.rel (0) target = $region33
    $region32: #{tpu_custom_call.1} parent=1 // pred_region
      %s345 = ssub.s32 64, 64
      %346 = vsyncadd [#allocation3], %s345
      %s348 = sshll.u32 [#allocation2], 4
      %s349 = int_to_ptr.vmem [resolvable:$true] %s348
      %351 = dma.vmem_to_hbm [thread:$0]  %s349, 64, %s7, [#allocation3]
    $region33: #{tpu_custom_call.1} parent=1 // pred_fallthru
      _
    // Predicated region
    $region34: #{tpu_custom_call.1} parent=1 // pred_check
      _
    $region35: #{tpu_custom_call.1} parent=1 // pred_check_branch
      %353 = sbr.rel (0) target = $region37
    $region36: #{tpu_custom_call.1} parent=1 // pred_region
      %354 = dma.done [#allocation3], 64
    $region37: #{tpu_custom_call.1} parent=1 // pred_fallthru
      _
    %355 = vsyncpa [#allocation3], 1

</llo_original>
